<compile_context>
chip_gen: v7x
topology: tpu7x:2x2x1
jax: 0.10.0
libtpu: 0.0.40
codegen_flags: <defaults>
</compile_context>

<pallas_src>
import functools

import jax
import jax.numpy as jnp
from jax.experimental import pallas as pl
from jax.experimental.pallas import tpu as pltpu

H_ND = 50          # hidden width from the PyTorch module
F_PAD = 128        # lane-padded feature width used inside the kernel
N_LAYERS = 6       # Linear(3,50), 4x Linear(50,50), Linear(50,3)
TB_MAX = 512       # batch tile; well under scoped VMEM on v5e/v6e/v7x


def _mlp_kernel(x_ref, w_ref, b_ref, o_ref):
    # x_ref: (TB, 3) f32      w_ref: (6, 128, 128) compute dtype
    # b_ref: (8, 128) f32     o_ref: (TB, 3) f32
    cdt = w_ref.dtype
    x3 = x_ref[...].astype(jnp.float32)                    # (TB, 3)

    # Layer 0: in_features = 3, so do it on the VPU with lane-broadcast FMAs
    # instead of padding x to 128 lanes and wasting an MXU pass with K=3.
    w0 = w_ref[0].astype(jnp.float32)                      # (128,128); rows 0..2 used
    h = (x3[:, 0:1] * w0[0:1, :]
         + x3[:, 1:2] * w0[1:2, :]
         + x3[:, 2:3] * w0[2:3, :]
         + b_ref[0:1, :])                                  # (TB, 128) f32
    h = jnp.tanh(h)

    # Layers 1..5: 128x128 (zero-padded) MXU matmuls, f32 accumulation.
    for i in range(1, N_LAYERS):
        h = jnp.dot(h.astype(cdt), w_ref[i],
                    preferred_element_type=jnp.float32)
        h = h + b_ref[i:i + 1, :]                          # (1,128) row broadcast
        if i < N_LAYERS - 1:
            h = jnp.tanh(h)

    # Only the first 3 lanes are meaningful -> narrow store, narrow HBM writeback.
    o_ref[...] = h[:, 0:3].astype(o_ref.dtype)


def _round_up(v, m):
    return ((v + m - 1) // m) * m


@functools.partial(jax.jit, static_argnames=("compute_dtype",))
def mlp_forward(x, weights, biases, compute_dtype=jnp.float32):
    """x: (N, 3) f32. weights[i]: (in_i, out_i). biases[i]: (out_i,).

    Matches the PyTorch nn.Sequential of Linear/Tanh where Linear.weight = w_ini[i].T,
    i.e. y = x @ w_ini[i] + b_ini[i].  compute_dtype=jnp.bfloat16 runs the matmuls
    with bf16 operands (f32 accumulation) for v6e/v7x MXU throughput.
    """
    n, fin = x.shape
    assert fin == 3 and len(weights) == N_LAYERS and len(biases) == N_LAYERS

    tb = min(TB_MAX, _round_up(n, 8))          # sublane-aligned batch tile
    n_pad = _round_up(n, tb)
    x_p = jnp.zeros((n_pad, fin), jnp.float32).at[:n, :].set(x.astype(jnp.float32))

    # Pack all layer params into two lane/sublane-aligned slabs.
    w_packed = jnp.zeros((N_LAYERS, F_PAD, F_PAD), compute_dtype)
    b_packed = jnp.zeros((8, F_PAD), jnp.float32)          # rows 0..5 used
    for i, (w, b) in enumerate(zip(weights, biases)):
        di, do = w.shape
        w_packed = w_packed.at[i, :di, :do].set(w.astype(compute_dtype))
        b_packed = b_packed.at[i, :do].set(b.astype(jnp.float32))

    grid = (n_pad // tb,)
    out = pl.pallas_call(
        _mlp_kernel,
        out_shape=jax.ShapeDtypeStruct((n_pad, fin), jnp.float32),
        grid_spec=pltpu.PrefetchScalarGridSpec(
            num_scalar_prefetch=0,
            grid=grid,
            in_specs=[
                pl.BlockSpec((tb, fin), lambda i: (i, 0)),                    # x rows
                pl.BlockSpec((N_LAYERS, F_PAD, F_PAD), lambda i: (0, 0, 0)),  # weights (resident)
                pl.BlockSpec((8, F_PAD), lambda i: (0, 0)),                   # biases  (resident)
            ],
            out_specs=pl.BlockSpec((tb, fin), lambda i: (i, 0)),
        ),
        compiler_params=pltpu.CompilerParams(
            dimension_semantics=("parallel",)),
    )(x_p, w_packed, b_packed)

    return out[:n, :]


def _init_params(key):
    """Deterministic synthetic w_ini / b_ini (same shapes the PyTorch __init__ expects)."""
    dims = [3] + [H_ND] * 5 + [3]
    weights, biases = [], []
    for i in range(N_LAYERS):
        key, kw, kb = jax.random.split(key, 3)
        fan_in, fan_out = dims[i], dims[i + 1]
        scale = 1.0 / jnp.sqrt(jnp.float32(fan_in))
        weights.append(jax.random.uniform(kw, (fan_in, fan_out), jnp.float32,
                                          minval=-scale, maxval=scale))
        biases.append(jax.random.uniform(kb, (fan_out,), jnp.float32,
                                         minval=-scale, maxval=scale))
    return weights, biases


def _reference(x, weights, biases):
    h = x
    for i in range(N_LAYERS):
        h = h @ weights[i] + biases[i]
        if i < N_LAYERS - 1:
            h = jnp.tanh(h)
    return h


if __name__ == "__main__":
    key = jax.random.PRNGKey(0)
    key, kx = jax.random.split(key)
    weights, biases = _init_params(key)

    # Small batch of (t, x, y) collocation points — input feature dim is 3.
    x = jax.random.normal(kx, (32, 3), jnp.float32)
    ref = _reference(x, weights, biases)

    # f32 path (default) — matches the PyTorch forward at tight tolerance.
    out = jax.block_until_ready(mlp_forward(x, weights, biases))
    assert out.shape == (32, 3), out.shape
    assert jnp.allclose(out, ref, atol=1e-5, rtol=1e-5), float(jnp.max(jnp.abs(out - ref)))

    # Optional bf16-weight path (v6e/v7x MXU-native); looser tolerance expected.
    out_bf16 = jax.block_until_ready(
        mlp_forward(x, weights, biases, compute_dtype=jnp.bfloat16))
    assert jnp.allclose(out_bf16, ref, atol=5e-2, rtol=5e-2), \
        float(jnp.max(jnp.abs(out_bf16 - ref)))

    print("KERNEL_OK")
</pallas_src>

<mosaic_0001>
module attributes {stable_mosaic.version = 11 : i64} {
  func.func @_mlp_kernel(%arg0: i32, %arg1: memref<32x3xf32, #tpu.memory_space<vmem>>, %arg2: memref<6x128x128xf32, #tpu.memory_space<vmem>>, %arg3: memref<8x128xf32, #tpu.memory_space<vmem>>, %arg4: memref<32x3xf32, #tpu.memory_space<vmem>>) attributes {dimension_semantics = [#tpu.dimension_semantics<parallel>], iteration_bounds = array<i64: 1>, scalar_prefetch = 0 : i64, scratch_operands = 0 : i64, tpu.core_type = #tpu.core_type<tc>, window_params = [{transform_indices = @transform_0, window_bounds = array<i64: 32, 3>}, {pipeline_mode = #tpu.pipeline_mode<synchronous>, transform_indices = @transform_1, window_bounds = array<i64: 6, 128, 128>}, {pipeline_mode = #tpu.pipeline_mode<synchronous>, transform_indices = @transform_2, window_bounds = array<i64: 8, 128>}, {transform_indices = @transform_3, window_bounds = array<i64: 32, 3>}]} {
    %c0 = arith.constant 0 : index
    %c0_0 = arith.constant 0 : index
    %0 = vector.load %arg1[%c0, %c0_0] : memref<32x3xf32, #tpu.memory_space<vmem>>, vector<32x3xf32>
    %c0_1 = arith.constant 0 : index
    %c0_2 = arith.constant 0 : index
    %c0_3 = arith.constant 0 : index
    %1 = vector.load %arg2[%c0_1, %c0_2, %c0_3] : memref<6x128x128xf32, #tpu.memory_space<vmem>>, vector<1x128x128xf32>
    %2 = vector.shape_cast %1 : vector<1x128x128xf32> to vector<128x128xf32>
    %3 = vector.extract_strided_slice %0 {offsets = [0, 0], sizes = [32, 1], strides = [1, 1]} : vector<32x3xf32> to vector<32x1xf32>
    %4 = vector.extract_strided_slice %2 {offsets = [0, 0], sizes = [1, 128], strides = [1, 1]} : vector<128x128xf32> to vector<1x128xf32>
    %5 = vector.broadcast %3 : vector<32x1xf32> to vector<32x128xf32>
    %6 = vector.broadcast %4 : vector<1x128xf32> to vector<32x128xf32>
    %7 = arith.mulf %5, %6 : vector<32x128xf32>
    %8 = vector.extract_strided_slice %0 {offsets = [0, 1], sizes = [32, 1], strides = [1, 1]} : vector<32x3xf32> to vector<32x1xf32>
    %9 = vector.extract_strided_slice %2 {offsets = [1, 0], sizes = [1, 128], strides = [1, 1]} : vector<128x128xf32> to vector<1x128xf32>
    %10 = vector.broadcast %8 : vector<32x1xf32> to vector<32x128xf32>
    %11 = vector.broadcast %9 : vector<1x128xf32> to vector<32x128xf32>
    %12 = arith.mulf %10, %11 : vector<32x128xf32>
    %13 = arith.addf %7, %12 : vector<32x128xf32>
    %14 = vector.extract_strided_slice %0 {offsets = [0, 2], sizes = [32, 1], strides = [1, 1]} : vector<32x3xf32> to vector<32x1xf32>
    %15 = vector.extract_strided_slice %2 {offsets = [2, 0], sizes = [1, 128], strides = [1, 1]} : vector<128x128xf32> to vector<1x128xf32>
    %16 = vector.broadcast %14 : vector<32x1xf32> to vector<32x128xf32>
    %17 = vector.broadcast %15 : vector<1x128xf32> to vector<32x128xf32>
    %18 = arith.mulf %16, %17 : vector<32x128xf32>
    %19 = arith.addf %13, %18 : vector<32x128xf32>
    %c0_4 = arith.constant 0 : index
    %c0_5 = arith.constant 0 : index
    %20 = vector.load %arg3[%c0_4, %c0_5] : memref<8x128xf32, #tpu.memory_space<vmem>>, vector<1x128xf32>
    %21 = vector.broadcast %20 : vector<1x128xf32> to vector<32x128xf32>
    %22 = arith.addf %19, %21 : vector<32x128xf32>
    %23 = math.tanh %22 : vector<32x128xf32>
    %c1 = arith.constant 1 : index
    %c0_6 = arith.constant 0 : index
    %c0_7 = arith.constant 0 : index
    %24 = vector.load %arg2[%c1, %c0_6, %c0_7] : memref<6x128x128xf32, #tpu.memory_space<vmem>>, vector<1x128x128xf32>
    %25 = vector.shape_cast %24 : vector<1x128x128xf32> to vector<128x128xf32>
    %cst = arith.constant dense<0.000000e+00> : vector<32x128xf32>
    %26 = tpu.matmul %23, %25, %cst {dimension_numbers = #tpu.dot_dimension_numbers<[1], [0], [0], [1], [0, 0, 1, 1], [], []>} : vector<32x128xf32>, vector<128x128xf32>, vector<32x128xf32> -> vector<32x128xf32>
    %c1_8 = arith.constant 1 : index
    %c0_9 = arith.constant 0 : index
    %27 = vector.load %arg3[%c1_8, %c0_9] : memref<8x128xf32, #tpu.memory_space<vmem>>, vector<1x128xf32>
    %28 = vector.broadcast %27 : vector<1x128xf32> to vector<32x128xf32>
    %29 = arith.addf %26, %28 : vector<32x128xf32>
    %30 = math.tanh %29 : vector<32x128xf32>
    %c2 = arith.constant 2 : index
    %c0_10 = arith.constant 0 : index
    %c0_11 = arith.constant 0 : index
    %31 = vector.load %arg2[%c2, %c0_10, %c0_11] : memref<6x128x128xf32, #tpu.memory_space<vmem>>, vector<1x128x128xf32>
    %32 = vector.shape_cast %31 : vector<1x128x128xf32> to vector<128x128xf32>
    %cst_12 = arith.constant dense<0.000000e+00> : vector<32x128xf32>
    %33 = tpu.matmul %30, %32, %cst_12 {dimension_numbers = #tpu.dot_dimension_numbers<[1], [0], [0], [1], [0, 0, 1, 1], [], []>} : vector<32x128xf32>, vector<128x128xf32>, vector<32x128xf32> -> vector<32x128xf32>
    %c2_13 = arith.constant 2 : index
    %c0_14 = arith.constant 0 : index
    %34 = vector.load %arg3[%c2_13, %c0_14] : memref<8x128xf32, #tpu.memory_space<vmem>>, vector<1x128xf32>
    %35 = vector.broadcast %34 : vector<1x128xf32> to vector<32x128xf32>
    %36 = arith.addf %33, %35 : vector<32x128xf32>
    %37 = math.tanh %36 : vector<32x128xf32>
    %c3 = arith.constant 3 : index
    %c0_15 = arith.constant 0 : index
    %c0_16 = arith.constant 0 : index
    %38 = vector.load %arg2[%c3, %c0_15, %c0_16] : memref<6x128x128xf32, #tpu.memory_space<vmem>>, vector<1x128x128xf32>
    %39 = vector.shape_cast %38 : vector<1x128x128xf32> to vector<128x128xf32>
    %cst_17 = arith.constant dense<0.000000e+00> : vector<32x128xf32>
    %40 = tpu.matmul %37, %39, %cst_17 {dimension_numbers = #tpu.dot_dimension_numbers<[1], [0], [0], [1], [0, 0, 1, 1], [], []>} : vector<32x128xf32>, vector<128x128xf32>, vector<32x128xf32> -> vector<32x128xf32>
    %c3_18 = arith.constant 3 : index
    %c0_19 = arith.constant 0 : index
    %41 = vector.load %arg3[%c3_18, %c0_19] : memref<8x128xf32, #tpu.memory_space<vmem>>, vector<1x128xf32>
    %42 = vector.broadcast %41 : vector<1x128xf32> to vector<32x128xf32>
    %43 = arith.addf %40, %42 : vector<32x128xf32>
    %44 = math.tanh %43 : vector<32x128xf32>
    %c4 = arith.constant 4 : index
    %c0_20 = arith.constant 0 : index
    %c0_21 = arith.constant 0 : index
    %45 = vector.load %arg2[%c4, %c0_20, %c0_21] : memref<6x128x128xf32, #tpu.memory_space<vmem>>, vector<1x128x128xf32>
    %46 = vector.shape_cast %45 : vector<1x128x128xf32> to vector<128x128xf32>
    %cst_22 = arith.constant dense<0.000000e+00> : vector<32x128xf32>
    %47 = tpu.matmul %44, %46, %cst_22 {dimension_numbers = #tpu.dot_dimension_numbers<[1], [0], [0], [1], [0, 0, 1, 1], [], []>} : vector<32x128xf32>, vector<128x128xf32>, vector<32x128xf32> -> vector<32x128xf32>
    %c4_23 = arith.constant 4 : index
    %c0_24 = arith.constant 0 : index
    %48 = vector.load %arg3[%c4_23, %c0_24] : memref<8x128xf32, #tpu.memory_space<vmem>>, vector<1x128xf32>
    %49 = vector.broadcast %48 : vector<1x128xf32> to vector<32x128xf32>
    %50 = arith.addf %47, %49 : vector<32x128xf32>
    %51 = math.tanh %50 : vector<32x128xf32>
    %c5 = arith.constant 5 : index
    %c0_25 = arith.constant 0 : index
    %c0_26 = arith.constant 0 : index
    %52 = vector.load %arg2[%c5, %c0_25, %c0_26] : memref<6x128x128xf32, #tpu.memory_space<vmem>>, vector<1x128x128xf32>
    %53 = vector.shape_cast %52 : vector<1x128x128xf32> to vector<128x128xf32>
    %cst_27 = arith.constant dense<0.000000e+00> : vector<32x128xf32>
    %54 = tpu.matmul %51, %53, %cst_27 {dimension_numbers = #tpu.dot_dimension_numbers<[1], [0], [0], [1], [0, 0, 1, 1], [], []>} : vector<32x128xf32>, vector<128x128xf32>, vector<32x128xf32> -> vector<32x128xf32>
    %c5_28 = arith.constant 5 : index
    %c0_29 = arith.constant 0 : index
    %55 = vector.load %arg3[%c5_28, %c0_29] : memref<8x128xf32, #tpu.memory_space<vmem>>, vector<1x128xf32>
    %56 = vector.broadcast %55 : vector<1x128xf32> to vector<32x128xf32>
    %57 = arith.addf %54, %56 : vector<32x128xf32>
    %58 = vector.extract_strided_slice %57 {offsets = [0, 0], sizes = [32, 3], strides = [1, 1]} : vector<32x128xf32> to vector<32x3xf32>
    %c0_30 = arith.constant 0 : index
    %c0_31 = arith.constant 0 : index
    %59 = vector.load %arg4[%c0_30, %c0_31] : memref<32x3xf32, #tpu.memory_space<vmem>>, vector<32x3xf32>
    tpu.vector_store %arg4[%c0_30, %c0_31], %58 {strides = array<i32>} : memref<32x3xf32, #tpu.memory_space<vmem>>, vector<32x3xf32>,
    return
  }
  func.func @transform_0(%arg0: i32) -> (i32, i32) {
    %c0_i32 = arith.constant 0 : i32
    %c0_i32_0 = arith.constant 0 : i32
    return %arg0, %c0_i32 : i32, i32
  }
  func.func @transform_1(%arg0: i32) -> (i32, i32, i32) {
    %c0_i32 = arith.constant 0 : i32
    %c0_i32_0 = arith.constant 0 : i32
    %c0_i32_1 = arith.constant 0 : i32
    %c0_i32_2 = arith.constant 0 : i32
    return %c0_i32, %c0_i32_0, %c0_i32_1 : i32, i32, i32
  }
  func.func @transform_2(%arg0: i32) -> (i32, i32) {
    %c0_i32 = arith.constant 0 : i32
    %c0_i32_0 = arith.constant 0 : i32
    %c0_i32_1 = arith.constant 0 : i32
    return %c0_i32, %c0_i32_0 : i32, i32
  }
  func.func @transform_3(%arg0: i32) -> (i32, i32) {
    %c0_i32 = arith.constant 0 : i32
    %c0_i32_0 = arith.constant 0 : i32
    return %arg0, %c0_i32 : i32, i32
  }
}

</mosaic_0001>

<llo_original>
// kernel: mlp_forward.1
$region0: #{mlp_forward.1}
  #allocation0 [shape = 'u32[]', space=smem, size = 0x4, offset = 0x4, fixed_abs, tag = 'smem constant byte address 0x4 - core index']
  #allocation1 [shape = 'u32[144,128]{1,0:T(1,128)}', space=vmem, size = 0x12000, scoped, tag = 'internal scratch']
  %s0 = inlined_call_operand.vmem [shape: f32[32,3], index: 0, kind: input, shape index: {}]
  %s1 = inlined_call_operand.vmem [shape: f32[6,128,128], index: 1, kind: input, shape index: {}]
  %s2 = inlined_call_operand.vmem [shape: f32[8,128], index: 2, kind: input, shape index: {}]
  %s3 = inlined_call_operand.vmem [shape: f32[32,3], index: 3, kind: output, shape index: {}]
  %s4 = sld [smem:[#allocation0]]
  $region22: #{mlp_forward.1} parent=0
    _
  %s6 = ssub.s32 1, %s4
  %s7 = scalar_select 0, %s6, %s4
  // Predicated region
  $region2: #{mlp_forward.1} parent=0 // pred_check
    _
  $region3: #{mlp_forward.1} parent=0 // pred_check_branch
    %9 = sbr.rel (0) target = $region5
  $region4: #{mlp_forward.1} parent=0 // pred_region
    _
  $region5: #{mlp_forward.1} parent=0 // pred_fallthru
    _
  // Predicated region
  $region6: #{mlp_forward.1} parent=0 // pred_check
    _
  $region7: #{mlp_forward.1} parent=0 // pred_check_branch
    %11 = sbr.rel (0) target = $region9
  $region8: #{mlp_forward.1} parent=0 // pred_region
    _
  $region9: #{mlp_forward.1} parent=0 // pred_fallthru
    _
  // Predicated region
  $region10: #{mlp_forward.1} parent=0 // pred_check
    _
  $region11: #{mlp_forward.1} parent=0 // pred_check_branch
    %13 = sbr.rel (0) target = $region13
  $region12: #{mlp_forward.1} parent=0 // pred_region
    _
  $region13: #{mlp_forward.1} parent=0 // pred_fallthru
    _
  %v14 = vld [vmem:[%s0] sm:$0xff]
  %v15 = vld [vmem:[%s0 + $0x8] sm:$0xff]
  %v16 = vld [vmem:[%s0 + $0x10] sm:$0xff]
  %v17 = vld [vmem:[%s0 + $0x18] sm:$0xff]
  %v18 = vld [vmem:[%s1] sm:$0xff]
  %20 = vset.pattern.permute.xlu0 0
  %21 = vperm.xlu0 %20, %v14
  %v22 = vpop.permute.xlu0 %21
  %25 = vset.pattern.permute.xlu0 0
  %26 = vperm.xlu0 %25, %v15
  %v27 = vpop.permute.xlu0 %26
  %30 = vset.pattern.permute.xlu0 0
  %31 = vperm.xlu0 %30, %v16
  %v32 = vpop.permute.xlu0 %31
  %35 = vset.pattern.permute.xlu0 0
  %36 = vperm.xlu0 %35, %v17
  %v37 = vpop.permute.xlu0 %36
  %v39 = vlaneseq
  %v40 = vshrl.u32 %v39, 7
  %v41 = vsub.s32 0, %v40
  %v42 = vrot.slane %v18, %v41
  %v43 = vmul.f32 %v22, %v42
  %v44 = vmul.f32 %v27, %v42
  %v45 = vmul.f32 %v32, %v42
  %v46 = vmul.f32 %v37, %v42
  %47 = vset.pattern.permute.xlu0 1
  %48 = vperm.xlu0 %47, %v14
  %v49 = vpop.permute.xlu0 %48
  %51 = vset.pattern.permute.xlu0 1
  %52 = vperm.xlu0 %51, %v15
  %v53 = vpop.permute.xlu0 %52
  %55 = vset.pattern.permute.xlu0 1
  %56 = vperm.xlu0 %55, %v16
  %v57 = vpop.permute.xlu0 %56
  %59 = vset.pattern.permute.xlu0 1
  %60 = vperm.xlu0 %59, %v17
  %v61 = vpop.permute.xlu0 %60
  %v63 = vlaneseq
  %v64 = vshrl.u32 %v63, 7
  %v65 = vsub.s32 1, %v64
  %v66 = vrot.slane %v18, %v65
  %v67 = vmul.f32 %v49, %v66
  %v68 = vmul.f32 %v53, %v66
  %v69 = vmul.f32 %v57, %v66
  %v70 = vmul.f32 %v61, %v66
  %v71 = vadd.f32 %v43, %v67
  %v72 = vadd.f32 %v44, %v68
  %v73 = vadd.f32 %v45, %v69
  %v74 = vadd.f32 %v46, %v70
  %75 = vset.pattern.permute.xlu0 2
  %76 = vperm.xlu0 %75, %v14
  %v77 = vpop.permute.xlu0 %76
  %79 = vset.pattern.permute.xlu0 2
  %80 = vperm.xlu0 %79, %v15
  %v81 = vpop.permute.xlu0 %80
  %83 = vset.pattern.permute.xlu0 2
  %84 = vperm.xlu0 %83, %v16
  %v85 = vpop.permute.xlu0 %84
  %87 = vset.pattern.permute.xlu0 2
  %88 = vperm.xlu0 %87, %v17
  %v89 = vpop.permute.xlu0 %88
  %v91 = vlaneseq
  %v92 = vshrl.u32 %v91, 7
  %v93 = vsub.s32 2, %v92
  %v94 = vrot.slane %v18, %v93
  %v95 = vmul.f32 %v77, %v94
  %v96 = vmul.f32 %v81, %v94
  %v97 = vmul.f32 %v85, %v94
  %v98 = vmul.f32 %v89, %v94
  %v99 = vadd.f32 %v71, %v95
  %v100 = vadd.f32 %v72, %v96
  %v101 = vadd.f32 %v73, %v97
  %v102 = vadd.f32 %v74, %v98
  %v103 = vld [vmem:[%s2] sm:$0x1]
  %v104 = vlaneseq
  %v105 = vshrl.u32 %v104, 7
  %v106 = vsub.s32 0, %v105
  %v107 = vrot.slane %v103, %v106
  %v108 = vadd.f32 %v99, %v107
  %v109 = vadd.f32 %v100, %v107
  %v110 = vadd.f32 %v101, %v107
  %v111 = vadd.f32 %v102, %v107
  %v112 = vtanh.pop %v108
  %v113 = vtanh.pop %v109
  %v114 = vtanh.pop %v110
  %v115 = vtanh.pop %v111
  %s116 = scalar_lea.vmem %s1, 128
  %v117 = vld [vmem:[%s116] sm:$0xff]
  %v118 = vld [vmem:[%s116 + $0x8] sm:$0xff]
  %v119 = vld [vmem:[%s116 + $0x10] sm:$0xff]
  %v120 = vld [vmem:[%s116 + $0x18] sm:$0xff]
  %v121 = vld [vmem:[%s116 + $0x20] sm:$0xff]
  %v122 = vld [vmem:[%s116 + $0x28] sm:$0xff]
  %v123 = vld [vmem:[%s116 + $0x30] sm:$0xff]
  %v124 = vld [vmem:[%s116 + $0x38] sm:$0xff]
  %v125 = vld [vmem:[%s116 + $0x40] sm:$0xff]
  %v126 = vld [vmem:[%s116 + $0x48] sm:$0xff]
  %v127 = vld [vmem:[%s116 + $0x50] sm:$0xff]
  %v128 = vld [vmem:[%s116 + $0x58] sm:$0xff]
  %v129 = vld [vmem:[%s116 + $0x60] sm:$0xff]
  %v130 = vld [vmem:[%s116 + $0x68] sm:$0xff]
  %v131 = vld [vmem:[%s116 + $0x70] sm:$0xff]
  %v132 = vld [vmem:[%s116 + $0x78] sm:$0xff]
  %v133 = vld [vmem:[%s2 + $0x1] sm:$0x1]
  %v134 = vlaneseq
  %v135 = vshrl.u32 %v134, 7
  %v136 = vsub.s32 0, %v135
  %v137 = vrot.slane %v133, %v136
  %138 = vmatprep.subr.mxu0 0.0
  %139 = vmatpush1.msra.mxu0 %v117
  %140 = vmatprep.subr.mxu0 0.0
  %141 = vmatpush1.msra.mxu0 %v118
  %142 = vmatprep.subr.mxu0 0.0
  %143 = vmatpush1.msra.mxu0 %v119
  %144 = vmatprep.subr.mxu0 0.0
  %145 = vmatpush1.msra.mxu0 %v120
  %146 = vmatprep.subr.mxu0 0.0
  %147 = vmatpush1.msra.mxu0 %v121
  %148 = vmatprep.subr.mxu0 0.0
  %149 = vmatpush1.msra.mxu0 %v122
  %150 = vmatprep.subr.mxu0 0.0
  %151 = vmatpush1.msra.mxu0 %v123
  %152 = vmatprep.subr.mxu0 0.0
  %153 = vmatpush1.msra.mxu0 %v124
  %154 = vmatprep.subr.mxu0 0.0
  %155 = vmatpush1.msra.mxu0 %v125
  %156 = vmatprep.subr.mxu0 0.0
  %157 = vmatpush1.msra.mxu0 %v126
  %158 = vmatprep.subr.mxu0 0.0
  %159 = vmatpush1.msra.mxu0 %v127
  %160 = vmatprep.subr.mxu0 0.0
  %161 = vmatpush1.msra.mxu0 %v128
  %162 = vmatprep.subr.mxu0 0.0
  %163 = vmatpush1.msra.mxu0 %v129
  %164 = vmatprep.subr.mxu0 0.0
  %165 = vmatpush1.msra.mxu0 %v130
  %166 = vmatprep.subr.mxu0 0.0
  %167 = vmatpush1.msra.mxu0 %v131
  %168 = vmatprep.subr.mxu0 0.0
  %169 = vmatpush1.msra.mxu0 %v132
  %170 = vmatprep.subr.mxu0 0.0
  %171 = vmatpush1.msra.mxu0 0.0
  %172 = vmatprep.subr.mxu0 0.0
  %173 = vmatpush1.msra.mxu0 0.0
  %174 = vmatprep.subr.mxu0 0.0
  %175 = vmatpush1.msra.mxu0 0.0
  %176 = vmatprep.subr.mxu0 0.0
  %177 = vmatpush1.msra.mxu0 0.0
  %178 = vmatprep.subr.mxu0 0.0
  %179 = vmatpush1.msra.mxu0 0.0
  %180 = vmatprep.subr.mxu0 0.0
  %181 = vmatpush1.msra.mxu0 0.0
  %182 = vmatprep.subr.mxu0 0.0
  %183 = vmatpush1.msra.mxu0 0.0
  %184 = vmatprep.subr.mxu0 0.0
  %185 = vmatpush1.msra.mxu0 0.0
  %186 = vmatprep.subr.mxu0 0.0
  %187 = vmatpush1.msra.mxu0 0.0
  %188 = vmatprep.subr.mxu0 0.0
  %189 = vmatpush1.msra.mxu0 0.0
  %190 = vmatprep.subr.mxu0 0.0
  %191 = vmatpush1.msra.mxu0 0.0
  %192 = vmatprep.subr.mxu0 0.0
  %193 = vmatpush1.msra.mxu0 0.0
  %194 = vmatprep.subr.mxu0 0.0
  %195 = vmatpush1.msra.mxu0 0.0
  %196 = vmatprep.subr.mxu0 0.0
  %197 = vmatpush1.msra.mxu0 0.0
  %198 = vmatprep.subr.mxu0 0.0
  %199 = vmatpush1.msra.mxu0 0.0
  %200 = vmatprep.subr.mxu0 0.0
  %201 = vmatpush1.msra.mxu0 0.0
  %202 = vmatprep.mubr.f32.mxu0 0.0
  %203 = vmatmul.mubr.f32.gmra.mrb[0].mxu0 %v112
  %v204 = vpop.f32.mrb[0].mxu0
  %v205 = vadd.f32 %v137, %v204
  %v206 = vpop.f32.mrb[0].mxu0
  %207 = vmatprep.mubr.f32.mxu0 0.0
  %208 = vmatmul.mubr.f32.gmra.mrb[0].mxu0 %v113
  %v209 = vpop.f32.mrb[0].mxu0
  %v210 = vadd.f32 %v137, %v209
  %v211 = vpop.f32.mrb[0].mxu0
  %212 = vmatprep.mubr.f32.mxu0 0.0
  %213 = vmatmul.mubr.f32.gmra.mrb[0].mxu0 %v114
  %v214 = vpop.f32.mrb[0].mxu0
  %v215 = vadd.f32 %v137, %v214
  %v216 = vpop.f32.mrb[0].mxu0
  %217 = vmatprep.mubr.f32.mxu0 0.0
  %218 = vmatmul.mubr.f32.gmra.mrb[0].mxu0 %v115
  %v219 = vpop.f32.mrb[0].mxu0
  %v220 = vadd.f32 %v137, %v219
  %v221 = vpop.f32.mrb[0].mxu0
  %222 = vdwg.mxu0
  %v223 = vtanh.pop %v205
  %v224 = vtanh.pop %v210
  %v225 = vtanh.pop %v215
  %v226 = vtanh.pop %v220
  %s227 = scalar_lea.vmem %s1, 256
  %v228 = vld [vmem:[%s227] sm:$0xff]
  %v229 = vld [vmem:[%s227 + $0x8] sm:$0xff]
  %v230 = vld [vmem:[%s227 + $0x10] sm:$0xff]
  %v231 = vld [vmem:[%s227 + $0x18] sm:$0xff]
  %v232 = vld [vmem:[%s227 + $0x20] sm:$0xff]
  %v233 = vld [vmem:[%s227 + $0x28] sm:$0xff]
  %v234 = vld [vmem:[%s227 + $0x30] sm:$0xff]
  %v235 = vld [vmem:[%s227 + $0x38] sm:$0xff]
  %v236 = vld [vmem:[%s227 + $0x40] sm:$0xff]
  %v237 = vld [vmem:[%s227 + $0x48] sm:$0xff]
  %v238 = vld [vmem:[%s227 + $0x50] sm:$0xff]
  %v239 = vld [vmem:[%s227 + $0x58] sm:$0xff]
  %v240 = vld [vmem:[%s227 + $0x60] sm:$0xff]
  %v241 = vld [vmem:[%s227 + $0x68] sm:$0xff]
  %v242 = vld [vmem:[%s227 + $0x70] sm:$0xff]
  %v243 = vld [vmem:[%s227 + $0x78] sm:$0xff]
  %v244 = vld [vmem:[%s2 + $0x2] sm:$0x1]
  %v245 = vlaneseq
  %v246 = vshrl.u32 %v245, 7
  %v247 = vsub.s32 0, %v246
  %v248 = vrot.slane %v244, %v247
  %249 = vmatprep.subr.mxu0 0.0
  %250 = vmatpush1.msra.mxu0 %v228
  %251 = vmatprep.subr.mxu0 0.0
  %252 = vmatpush1.msra.mxu0 %v229
  %253 = vmatprep.subr.mxu0 0.0
  %254 = vmatpush1.msra.mxu0 %v230
  %255 = vmatprep.subr.mxu0 0.0
  %256 = vmatpush1.msra.mxu0 %v231
  %257 = vmatprep.subr.mxu0 0.0
  %258 = vmatpush1.msra.mxu0 %v232
  %259 = vmatprep.subr.mxu0 0.0
  %260 = vmatpush1.msra.mxu0 %v233
  %261 = vmatprep.subr.mxu0 0.0
  %262 = vmatpush1.msra.mxu0 %v234
  %263 = vmatprep.subr.mxu0 0.0
  %264 = vmatpush1.msra.mxu0 %v235
  %265 = vmatprep.subr.mxu0 0.0
  %266 = vmatpush1.msra.mxu0 %v236
  %267 = vmatprep.subr.mxu0 0.0
  %268 = vmatpush1.msra.mxu0 %v237
  %269 = vmatprep.subr.mxu0 0.0
  %270 = vmatpush1.msra.mxu0 %v238
  %271 = vmatprep.subr.mxu0 0.0
  %272 = vmatpush1.msra.mxu0 %v239
  %273 = vmatprep.subr.mxu0 0.0
  %274 = vmatpush1.msra.mxu0 %v240
  %275 = vmatprep.subr.mxu0 0.0
  %276 = vmatpush1.msra.mxu0 %v241
  %277 = vmatprep.subr.mxu0 0.0
  %278 = vmatpush1.msra.mxu0 %v242
  %279 = vmatprep.subr.mxu0 0.0
  %280 = vmatpush1.msra.mxu0 %v243
  %281 = vmatprep.subr.mxu0 0.0
  %282 = vmatpush1.msra.mxu0 0.0
  %283 = vmatprep.subr.mxu0 0.0
  %284 = vmatpush1.msra.mxu0 0.0
  %285 = vmatprep.subr.mxu0 0.0
  %286 = vmatpush1.msra.mxu0 0.0
  %287 = vmatprep.subr.mxu0 0.0
  %288 = vmatpush1.msra.mxu0 0.0
  %289 = vmatprep.subr.mxu0 0.0
  %290 = vmatpush1.msra.mxu0 0.0
  %291 = vmatprep.subr.mxu0 0.0
  %292 = vmatpush1.msra.mxu0 0.0
  %293 = vmatprep.subr.mxu0 0.0
  %294 = vmatpush1.msra.mxu0 0.0
  %295 = vmatprep.subr.mxu0 0.0
  %296 = vmatpush1.msra.mxu0 0.0
  %297 = vmatprep.subr.mxu0 0.0
  %298 = vmatpush1.msra.mxu0 0.0
  %299 = vmatprep.subr.mxu0 0.0
  %300 = vmatpush1.msra.mxu0 0.0
  %301 = vmatprep.subr.mxu0 0.0
  %302 = vmatpush1.msra.mxu0 0.0
  %303 = vmatprep.subr.mxu0 0.0
  %304 = vmatpush1.msra.mxu0 0.0
  %305 = vmatprep.subr.mxu0 0.0
  %306 = vmatpush1.msra.mxu0 0.0
  %307 = vmatprep.subr.mxu0 0.0
  %308 = vmatpush1.msra.mxu0 0.0
  %309 = vmatprep.subr.mxu0 0.0
  %310 = vmatpush1.msra.mxu0 0.0
  %311 = vmatprep.subr.mxu0 0.0
  %312 = vmatpush1.msra.mxu0 0.0
  %313 = vmatprep.mubr.f32.mxu0 0.0
  %314 = vmatmul.mubr.f32.gmra.mrb[0].mxu0 %v223
  %v315 = vpop.f32.mrb[0].mxu0
  %v316 = vadd.f32 %v248, %v315
  %v317 = vpop.f32.mrb[0].mxu0
  %318 = vmatprep.mubr.f32.mxu0 0.0
  %319 = vmatmul.mubr.f32.gmra.mrb[0].mxu0 %v224
  %v320 = vpop.f32.mrb[0].mxu0
  %v321 = vadd.f32 %v248, %v320
  %v322 = vpop.f32.mrb[0].mxu0
  %323 = vmatprep.mubr.f32.mxu0 0.0
  %324 = vmatmul.mubr.f32.gmra.mrb[0].mxu0 %v225
  %v325 = vpop.f32.mrb[0].mxu0
  %v326 = vadd.f32 %v248, %v325
  %v327 = vpop.f32.mrb[0].mxu0
  %328 = vmatprep.mubr.f32.mxu0 0.0
  %329 = vmatmul.mubr.f32.gmra.mrb[0].mxu0 %v226
  %v330 = vpop.f32.mrb[0].mxu0
  %v331 = vadd.f32 %v248, %v330
  %v332 = vpop.f32.mrb[0].mxu0
  %333 = vdwg.mxu0
  %v334 = vtanh.pop %v316
  %v335 = vtanh.pop %v321
  %v336 = vtanh.pop %v326
  %v337 = vtanh.pop %v331
  %s338 = scalar_lea.vmem %s1, 384
  %v339 = vld [vmem:[%s338] sm:$0xff]
  %v340 = vld [vmem:[%s338 + $0x8] sm:$0xff]
  %v341 = vld [vmem:[%s338 + $0x10] sm:$0xff]
  %v342 = vld [vmem:[%s338 + $0x18] sm:$0xff]
  %v343 = vld [vmem:[%s338 + $0x20] sm:$0xff]
  %v344 = vld [vmem:[%s338 + $0x28] sm:$0xff]
  %v345 = vld [vmem:[%s338 + $0x30] sm:$0xff]
  %v346 = vld [vmem:[%s338 + $0x38] sm:$0xff]
  %v347 = vld [vmem:[%s338 + $0x40] sm:$0xff]
  %v348 = vld [vmem:[%s338 + $0x48] sm:$0xff]
  %v349 = vld [vmem:[%s338 + $0x50] sm:$0xff]
  %v350 = vld [vmem:[%s338 + $0x58] sm:$0xff]
  %v351 = vld [vmem:[%s338 + $0x60] sm:$0xff]
  %v352 = vld [vmem:[%s338 + $0x68] sm:$0xff]
  %v353 = vld [vmem:[%s338 + $0x70] sm:$0xff]
  %v354 = vld [vmem:[%s338 + $0x78] sm:$0xff]
  %v355 = vld [vmem:[%s2 + $0x3] sm:$0x1]
  %v356 = vlaneseq
  %v357 = vshrl.u32 %v356, 7
  %v358 = vsub.s32 0, %v357
  %v359 = vrot.slane %v355, %v358
  %360 = vmatprep.subr.mxu0 0.0
  %361 = vmatpush1.msra.mxu0 %v339
  %362 = vmatprep.subr.mxu0 0.0
  %363 = vmatpush1.msra.mxu0 %v340
  %364 = vmatprep.subr.mxu0 0.0
  %365 = vmatpush1.msra.mxu0 %v341
  %366 = vmatprep.subr.mxu0 0.0
  %367 = vmatpush1.msra.mxu0 %v342
  %368 = vmatprep.subr.mxu0 0.0
  %369 = vmatpush1.msra.mxu0 %v343
  %370 = vmatprep.subr.mxu0 0.0
  %371 = vmatpush1.msra.mxu0 %v344
  %372 = vmatprep.subr.mxu0 0.0
  %373 = vmatpush1.msra.mxu0 %v345
  %374 = vmatprep.subr.mxu0 0.0
  %375 = vmatpush1.msra.mxu0 %v346
  %376 = vmatprep.subr.mxu0 0.0
  %377 = vmatpush1.msra.mxu0 %v347
  %378 = vmatprep.subr.mxu0 0.0
  %379 = vmatpush1.msra.mxu0 %v348
  %380 = vmatprep.subr.mxu0 0.0
  %381 = vmatpush1.msra.mxu0 %v349
  %382 = vmatprep.subr.mxu0 0.0
  %383 = vmatpush1.msra.mxu0 %v350
  %384 = vmatprep.subr.mxu0 0.0
  %385 = vmatpush1.msra.mxu0 %v351
  %386 = vmatprep.subr.mxu0 0.0
  %387 = vmatpush1.msra.mxu0 %v352
  %388 = vmatprep.subr.mxu0 0.0
  %389 = vmatpush1.msra.mxu0 %v353
  %390 = vmatprep.subr.mxu0 0.0
  %391 = vmatpush1.msra.mxu0 %v354
  %392 = vmatprep.subr.mxu0 0.0
  %393 = vmatpush1.msra.mxu0 0.0
  %394 = vmatprep.subr.mxu0 0.0
  %395 = vmatpush1.msra.mxu0 0.0
  %396 = vmatprep.subr.mxu0 0.0
  %397 = vmatpush1.msra.mxu0 0.0
  %398 = vmatprep.subr.mxu0 0.0
  %399 = vmatpush1.msra.mxu0 0.0
  %400 = vmatprep.subr.mxu0 0.0
  %401 = vmatpush1.msra.mxu0 0.0
  %402 = vmatprep.subr.mxu0 0.0
  %403 = vmatpush1.msra.mxu0 0.0
  %404 = vmatprep.subr.mxu0 0.0
  %405 = vmatpush1.msra.mxu0 0.0
  %406 = vmatprep.subr.mxu0 0.0
  %407 = vmatpush1.msra.mxu0 0.0
  %408 = vmatprep.subr.mxu0 0.0
  %409 = vmatpush1.msra.mxu0 0.0
  %410 = vmatprep.subr.mxu0 0.0
  %411 = vmatpush1.msra.mxu0 0.0
  %412 = vmatprep.subr.mxu0 0.0
  %413 = vmatpush1.msra.mxu0 0.0
  %414 = vmatprep.subr.mxu0 0.0
  %415 = vmatpush1.msra.mxu0 0.0
  %416 = vmatprep.subr.mxu0 0.0
  %417 = vmatpush1.msra.mxu0 0.0
  %418 = vmatprep.subr.mxu0 0.0
  %419 = vmatpush1.msra.mxu0 0.0
  %420 = vmatprep.subr.mxu0 0.0
  %421 = vmatpush1.msra.mxu0 0.0
  %422 = vmatprep.subr.mxu0 0.0
  %423 = vmatpush1.msra.mxu0 0.0
  %424 = vmatprep.mubr.f32.mxu0 0.0
  %425 = vmatmul.mubr.f32.gmra.mrb[0].mxu0 %v334
  %v426 = vpop.f32.mrb[0].mxu0
  %v427 = vadd.f32 %v359, %v426
  %v428 = vpop.f32.mrb[0].mxu0
  %429 = vmatprep.mubr.f32.mxu0 0.0
  %430 = vmatmul.mubr.f32.gmra.mrb[0].mxu0 %v335
  %v431 = vpop.f32.mrb[0].mxu0
  %v432 = vadd.f32 %v359, %v431
  %v433 = vpop.f32.mrb[0].mxu0
  %434 = vmatprep.mubr.f32.mxu0 0.0
  %435 = vmatmul.mubr.f32.gmra.mrb[0].mxu0 %v336
  %v436 = vpop.f32.mrb[0].mxu0
  %v437 = vadd.f32 %v359, %v436
  %v438 = vpop.f32.mrb[0].mxu0
  %439 = vmatprep.mubr.f32.mxu0 0.0
  %440 = vmatmul.mubr.f32.gmra.mrb[0].mxu0 %v337
  %v441 = vpop.f32.mrb[0].mxu0
  %v442 = vadd.f32 %v359, %v441
  %v443 = vpop.f32.mrb[0].mxu0
  %444 = vdwg.mxu0
  %v445 = vtanh.pop %v427
  %v446 = vtanh.pop %v432
  %v447 = vtanh.pop %v437
  %v448 = vtanh.pop %v442
  %s449 = scalar_lea.vmem %s1, 512
  %v450 = vld [vmem:[%s449] sm:$0xff]
  %v451 = vld [vmem:[%s449 + $0x8] sm:$0xff]
  %v452 = vld [vmem:[%s449 + $0x10] sm:$0xff]
  %v453 = vld [vmem:[%s449 + $0x18] sm:$0xff]
  %v454 = vld [vmem:[%s449 + $0x20] sm:$0xff]
  %v455 = vld [vmem:[%s449 + $0x28] sm:$0xff]
  %v456 = vld [vmem:[%s449 + $0x30] sm:$0xff]
  %v457 = vld [vmem:[%s449 + $0x38] sm:$0xff]
  %v458 = vld [vmem:[%s449 + $0x40] sm:$0xff]
  %v459 = vld [vmem:[%s449 + $0x48] sm:$0xff]
  %v460 = vld [vmem:[%s449 + $0x50] sm:$0xff]
  %v461 = vld [vmem:[%s449 + $0x58] sm:$0xff]
  %v462 = vld [vmem:[%s449 + $0x60] sm:$0xff]
  %v463 = vld [vmem:[%s449 + $0x68] sm:$0xff]
  %v464 = vld [vmem:[%s449 + $0x70] sm:$0xff]
  %v465 = vld [vmem:[%s449 + $0x78] sm:$0xff]
  %v466 = vld [vmem:[%s2 + $0x4] sm:$0x1]
  %v467 = vlaneseq
  %v468 = vshrl.u32 %v467, 7
  %v469 = vsub.s32 0, %v468
  %v470 = vrot.slane %v466, %v469
  %471 = vmatprep.subr.mxu0 0.0
  %472 = vmatpush1.msra.mxu0 %v450
  %473 = vmatprep.subr.mxu0 0.0
  %474 = vmatpush1.msra.mxu0 %v451
  %475 = vmatprep.subr.mxu0 0.0
  %476 = vmatpush1.msra.mxu0 %v452
  %477 = vmatprep.subr.mxu0 0.0
  %478 = vmatpush1.msra.mxu0 %v453
  %479 = vmatprep.subr.mxu0 0.0
  %480 = vmatpush1.msra.mxu0 %v454
  %481 = vmatprep.subr.mxu0 0.0
  %482 = vmatpush1.msra.mxu0 %v455
  %483 = vmatprep.subr.mxu0 0.0
  %484 = vmatpush1.msra.mxu0 %v456
  %485 = vmatprep.subr.mxu0 0.0
  %486 = vmatpush1.msra.mxu0 %v457
  %487 = vmatprep.subr.mxu0 0.0
  %488 = vmatpush1.msra.mxu0 %v458
  %489 = vmatprep.subr.mxu0 0.0
  %490 = vmatpush1.msra.mxu0 %v459
  %491 = vmatprep.subr.mxu0 0.0
  %492 = vmatpush1.msra.mxu0 %v460
  %493 = vmatprep.subr.mxu0 0.0
  %494 = vmatpush1.msra.mxu0 %v461
  %495 = vmatprep.subr.mxu0 0.0
  %496 = vmatpush1.msra.mxu0 %v462
  %497 = vmatprep.subr.mxu0 0.0
  %498 = vmatpush1.msra.mxu0 %v463
  %499 = vmatprep.subr.mxu0 0.0
  %500 = vmatpush1.msra.mxu0 %v464
  %501 = vmatprep.subr.mxu0 0.0
  %502 = vmatpush1.msra.mxu0 %v465
  %503 = vmatprep.subr.mxu0 0.0
  %504 = vmatpush1.msra.mxu0 0.0
  %505 = vmatprep.subr.mxu0 0.0
  %506 = vmatpush1.msra.mxu0 0.0
  %507 = vmatprep.subr.mxu0 0.0
  %508 = vmatpush1.msra.mxu0 0.0
  %509 = vmatprep.subr.mxu0 0.0
  %510 = vmatpush1.msra.mxu0 0.0
  %511 = vmatprep.subr.mxu0 0.0
  %512 = vmatpush1.msra.mxu0 0.0
  %513 = vmatprep.subr.mxu0 0.0
  %514 = vmatpush1.msra.mxu0 0.0
  %515 = vmatprep.subr.mxu0 0.0
  %516 = vmatpush1.msra.mxu0 0.0
  %517 = vmatprep.subr.mxu0 0.0
  %518 = vmatpush1.msra.mxu0 0.0
  %519 = vmatprep.subr.mxu0 0.0
  %520 = vmatpush1.msra.mxu0 0.0
  %521 = vmatprep.subr.mxu0 0.0
  %522 = vmatpush1.msra.mxu0 0.0
  %523 = vmatprep.subr.mxu0 0.0
  %524 = vmatpush1.msra.mxu0 0.0
  %525 = vmatprep.subr.mxu0 0.0
  %526 = vmatpush1.msra.mxu0 0.0
  %527 = vmatprep.subr.mxu0 0.0
  %528 = vmatpush1.msra.mxu0 0.0
  %529 = vmatprep.subr.mxu0 0.0
  %530 = vmatpush1.msra.mxu0 0.0
  %531 = vmatprep.subr.mxu0 0.0
  %532 = vmatpush1.msra.mxu0 0.0
  %533 = vmatprep.subr.mxu0 0.0
  %534 = vmatpush1.msra.mxu0 0.0
  %535 = vmatprep.mubr.f32.mxu0 0.0
  %536 = vmatmul.mubr.f32.gmra.mrb[0].mxu0 %v445
  %v537 = vpop.f32.mrb[0].mxu0
  %v538 = vadd.f32 %v470, %v537
  %v539 = vpop.f32.mrb[0].mxu0
  %540 = vmatprep.mubr.f32.mxu0 0.0
  %541 = vmatmul.mubr.f32.gmra.mrb[0].mxu0 %v446
  %v542 = vpop.f32.mrb[0].mxu0
  %v543 = vadd.f32 %v470, %v542
  %v544 = vpop.f32.mrb[0].mxu0
  %545 = vmatprep.mubr.f32.mxu0 0.0
  %546 = vmatmul.mubr.f32.gmra.mrb[0].mxu0 %v447
  %v547 = vpop.f32.mrb[0].mxu0
  %v548 = vadd.f32 %v470, %v547
  %v549 = vpop.f32.mrb[0].mxu0
  %550 = vmatprep.mubr.f32.mxu0 0.0
  %551 = vmatmul.mubr.f32.gmra.mrb[0].mxu0 %v448
  %v552 = vpop.f32.mrb[0].mxu0
  %v553 = vadd.f32 %v470, %v552
  %v554 = vpop.f32.mrb[0].mxu0
  %555 = vdwg.mxu0
  %v556 = vtanh.pop %v538
  %v557 = vtanh.pop %v543
  %v558 = vtanh.pop %v548
  %v559 = vtanh.pop %v553
  %s560 = scalar_lea.vmem %s1, 640
  %v561 = vld [vmem:[%s560] sm:$0xff]
  %v562 = vld [vmem:[%s560 + $0x8] sm:$0xff]
  %v563 = vld [vmem:[%s560 + $0x10] sm:$0xff]
  %v564 = vld [vmem:[%s560 + $0x18] sm:$0xff]
  %v565 = vld [vmem:[%s560 + $0x20] sm:$0xff]
  %v566 = vld [vmem:[%s560 + $0x28] sm:$0xff]
  %v567 = vld [vmem:[%s560 + $0x30] sm:$0xff]
  %v568 = vld [vmem:[%s560 + $0x38] sm:$0xff]
  %v569 = vld [vmem:[%s560 + $0x40] sm:$0xff]
  %v570 = vld [vmem:[%s560 + $0x48] sm:$0xff]
  %v571 = vld [vmem:[%s560 + $0x50] sm:$0xff]
  %v572 = vld [vmem:[%s560 + $0x58] sm:$0xff]
  %v573 = vld [vmem:[%s560 + $0x60] sm:$0xff]
  %v574 = vld [vmem:[%s560 + $0x68] sm:$0xff]
  %v575 = vld [vmem:[%s560 + $0x70] sm:$0xff]
  %v576 = vld [vmem:[%s560 + $0x78] sm:$0xff]
  %v577 = vld [vmem:[%s2 + $0x5] sm:$0x1]
  %v578 = vlaneseq
  %v579 = vshrl.u32 %v578, 7
  %v580 = vsub.s32 0, %v579
  %v581 = vrot.slane %v577, %v580
  %582 = vmatprep.subr.mxu0 0.0
  %583 = vmatpush1.msra.mxu0 %v561
  %584 = vmatprep.subr.mxu0 0.0
  %585 = vmatpush1.msra.mxu0 %v562
  %586 = vmatprep.subr.mxu0 0.0
  %587 = vmatpush1.msra.mxu0 %v563
  %588 = vmatprep.subr.mxu0 0.0
  %589 = vmatpush1.msra.mxu0 %v564
  %590 = vmatprep.subr.mxu0 0.0
  %591 = vmatpush1.msra.mxu0 %v565
  %592 = vmatprep.subr.mxu0 0.0
  %593 = vmatpush1.msra.mxu0 %v566
  %594 = vmatprep.subr.mxu0 0.0
  %595 = vmatpush1.msra.mxu0 %v567
  %596 = vmatprep.subr.mxu0 0.0
  %597 = vmatpush1.msra.mxu0 %v568
  %598 = vmatprep.subr.mxu0 0.0
  %599 = vmatpush1.msra.mxu0 %v569
  %600 = vmatprep.subr.mxu0 0.0
  %601 = vmatpush1.msra.mxu0 %v570
  %602 = vmatprep.subr.mxu0 0.0
  %603 = vmatpush1.msra.mxu0 %v571
  %604 = vmatprep.subr.mxu0 0.0
  %605 = vmatpush1.msra.mxu0 %v572
  %606 = vmatprep.subr.mxu0 0.0
  %607 = vmatpush1.msra.mxu0 %v573
  %608 = vmatprep.subr.mxu0 0.0
  %609 = vmatpush1.msra.mxu0 %v574
  %610 = vmatprep.subr.mxu0 0.0
  %611 = vmatpush1.msra.mxu0 %v575
  %612 = vmatprep.subr.mxu0 0.0
  %613 = vmatpush1.msra.mxu0 %v576
  %614 = vmatprep.subr.mxu0 0.0
  %615 = vmatpush1.msra.mxu0 0.0
  %616 = vmatprep.subr.mxu0 0.0
  %617 = vmatpush1.msra.mxu0 0.0
  %618 = vmatprep.subr.mxu0 0.0
  %619 = vmatpush1.msra.mxu0 0.0
  %620 = vmatprep.subr.mxu0 0.0
  %621 = vmatpush1.msra.mxu0 0.0
  %622 = vmatprep.subr.mxu0 0.0
  %623 = vmatpush1.msra.mxu0 0.0
  %624 = vmatprep.subr.mxu0 0.0
  %625 = vmatpush1.msra.mxu0 0.0
  %626 = vmatprep.subr.mxu0 0.0
  %627 = vmatpush1.msra.mxu0 0.0
  %628 = vmatprep.subr.mxu0 0.0
  %629 = vmatpush1.msra.mxu0 0.0
  %630 = vmatprep.subr.mxu0 0.0
  %631 = vmatpush1.msra.mxu0 0.0
  %632 = vmatprep.subr.mxu0 0.0
  %633 = vmatpush1.msra.mxu0 0.0
  %634 = vmatprep.subr.mxu0 0.0
  %635 = vmatpush1.msra.mxu0 0.0
  %636 = vmatprep.subr.mxu0 0.0
  %637 = vmatpush1.msra.mxu0 0.0
  %638 = vmatprep.subr.mxu0 0.0
  %639 = vmatpush1.msra.mxu0 0.0
  %640 = vmatprep.subr.mxu0 0.0
  %641 = vmatpush1.msra.mxu0 0.0
  %642 = vmatprep.subr.mxu0 0.0
  %643 = vmatpush1.msra.mxu0 0.0
  %644 = vmatprep.subr.mxu0 0.0
  %645 = vmatpush1.msra.mxu0 0.0
  %646 = vmatprep.mubr.f32.mxu0 0.0
  %647 = vmatmul.mubr.f32.gmra.mrb[0].mxu0 %v556
  %v648 = vpop.f32.mrb[0].mxu0
  %v649 = vadd.f32 %v581, %v648
  %v650 = vpop.f32.mrb[0].mxu0
  %651 = vmatprep.mubr.f32.mxu0 0.0
  %652 = vmatmul.mubr.f32.gmra.mrb[0].mxu0 %v557
  %v653 = vpop.f32.mrb[0].mxu0
  %v654 = vadd.f32 %v581, %v653
  %v655 = vpop.f32.mrb[0].mxu0
  %656 = vmatprep.mubr.f32.mxu0 0.0
  %657 = vmatmul.mubr.f32.gmra.mrb[0].mxu0 %v558
  %v658 = vpop.f32.mrb[0].mxu0
  %v659 = vadd.f32 %v581, %v658
  %v660 = vpop.f32.mrb[0].mxu0
  %661 = vmatprep.mubr.f32.mxu0 0.0
  %662 = vmatmul.mubr.f32.gmra.mrb[0].mxu0 %v559
  %v663 = vpop.f32.mrb[0].mxu0
  %v664 = vadd.f32 %v581, %v663
  %v665 = vpop.f32.mrb[0].mxu0
  %666 = vdwg.mxu0
  %vm667 = vcmask 23552
  %668 = vst.msk [vmem:[%s3] sm:$0xff] %vm667, %v649
  %669 = vst.msk [vmem:[%s3 + $0x8] sm:$0xff] %vm667, %v654
  %670 = vst.msk [vmem:[%s3 + $0x10] sm:$0xff] %vm667, %v659
  %671 = vst.msk [vmem:[%s3 + $0x18] sm:$0xff] %vm667, %v664
  // Predicated region
  $region14: #{mlp_forward.1} parent=0 // pred_check
    _
  $region15: #{mlp_forward.1} parent=0 // pred_check_branch
    %673 = sbr.rel (0) target = $region17
  $region16: #{mlp_forward.1} parent=0 // pred_region
    _
  $region17: #{mlp_forward.1} parent=0 // pred_fallthru
    _
  // Predicated region
  $region18: #{mlp_forward.1} parent=0 // pred_check
    _
  $region19: #{mlp_forward.1} parent=0 // pred_check_branch
    %675 = sbr.rel (0) target = $region21
  $region20: #{mlp_forward.1} parent=0 // pred_region
    _
  $region21: #{mlp_forward.1} parent=0 // pred_fallthru
    _

</llo_original>
